<compile_context>
chip_gen: v6e
topology: v6e:2x2x1
jax: 0.10.0
libtpu: 0.0.40
codegen_flags: <defaults>
</compile_context>

<pallas_src>
import jax
import jax.numpy as jnp
from jax.experimental import pallas as pl
from jax.experimental.pallas import tpu as pltpu

EPS = 1e-12  # matches the PyTorch module's quirk; a no-op inside exp() in f32.


def _vi_kernel(x_ref, noise_ref, w_ref, b_ref, z_ref, kld_ref):
    """One grid step processes a (B, t_tile, Fin) slab of the input.

    Fused mean/log-var projection on the MXU, reparameterised sample z, and
    the per-timestep KL divergence (summed over batch and feature dims).
    """
    B, tT, Fin = x_ref.shape
    Fout = noise_ref.shape[-1]

    # Flatten (B, t_tile) -> M so the MXU sees one wide 2-D matmul that
    # computes BOTH projections at once: (M, Fin) x (Fin, 2*Fout).
    x2d = x_ref[...].reshape(B * tT, Fin)
    proj = jnp.dot(x2d, w_ref[...], preferred_element_type=jnp.float32)
    proj = proj + b_ref[...]                       # (M, 2*Fout), bias broadcast

    mean = proj[:, :Fout]                          # (M, Fout)
    var = proj[:, Fout:]                           # (M, Fout)

    # One EUP transcendental per element: s = exp(0.5*var); s*s == exp(var).
    s = jnp.exp(0.5 * var)

    # Reparameterisation trick with pre-generated Gaussian noise.
    noise2d = noise_ref[...].reshape(B * tT, Fout)
    z_ref[...] = (mean + noise2d * s).reshape(B, tT, Fout)

    # KL divergence term, reduced over batch and features -> (t_tile,).
    kld_terms = 1.0 + var - mean * mean - s * s    # (M, Fout)
    kld = -0.5 * jnp.sum(kld_terms.reshape(B, tT, Fout), axis=(0, 2))
    # Lane-dense writeback: time lives on the 128-lane axis of a (1, tT) block.
    kld_ref[...] = kld[None, :]


def _pick_t_tile(T):
    """Pick a time tile: lane-aligned multiple of 128 for large T, else full T."""
    if T % 128 == 0:
        for cand in (512, 256, 128):   # cap the slab so it fits v7x's 64 MiB VMEM
            if T % cand == 0:
                return cand
    return T  # single grid step; block == full array satisfies tiling rules


def variational_inference(x, noise, w_mean, b_mean, w_var, b_var, *, t_tile=None):
    """x: (B, T, Fin) f32; noise: (B, T, Fout) f32 (standard normal).

    Weights are PyTorch-style (out_features, in_features); biases (out_features,).
    Returns (z, KLd) with z: (B, T, Fout), KLd: (T,).
    """
    B, T, Fin = x.shape
    Fout = w_mean.shape[0]
    if t_tile is None:
        t_tile = _pick_t_tile(T)
    assert T % t_tile == 0, "T must be divisible by the time tile"
    assert t_tile == T or t_tile % 128 == 0, (
        "t_tile must be the full T or a multiple of 128 (lane-dense KLd block)")

    # Fuse the two projections: one (Fin, 2*Fout) weight, one (1, 2*Fout) bias.
    w_fused = jnp.concatenate([w_mean, w_var], axis=0).T          # (Fin, 2*Fout)
    b_fused = jnp.concatenate([b_mean, b_var], axis=0)[None, :]   # (1, 2*Fout)

    grid = (T // t_tile,)

    z, kld2d = pl.pallas_call(
        _vi_kernel,
        out_shape=(
            jax.ShapeDtypeStruct((B, T, Fout), jnp.float32),
            jax.ShapeDtypeStruct((1, T), jnp.float32),
        ),
        grid_spec=pltpu.PrefetchScalarGridSpec(
            num_scalar_prefetch=0,
            grid=grid,
            in_specs=[
                pl.BlockSpec((B, t_tile, Fin), lambda t: (0, t, 0)),    # x
                pl.BlockSpec((B, t_tile, Fout), lambda t: (0, t, 0)),   # noise
                # Constant index_map -> weights/bias DMA'd once, stay resident.
                pl.BlockSpec((Fin, 2 * Fout), lambda t: (0, 0)),        # W fused
                pl.BlockSpec((1, 2 * Fout), lambda t: (0, 0)),          # b fused
            ],
            out_specs=[
                pl.BlockSpec((B, t_tile, Fout), lambda t: (0, t, 0)),   # z
                pl.BlockSpec((1, t_tile), lambda t: (0, t)),            # KLd
            ],
        ),
        compiler_params=pltpu.CompilerParams(
            dimension_semantics=("parallel",)),
    )(x, noise, w_fused, b_fused)

    return z, kld2d[0]


def _reference(x, noise, w_mean, b_mean, w_var, b_var):
    mean = jnp.einsum('btf,gf->btg', x, w_mean) + b_mean
    var = jnp.einsum('btf,gf->btg', x, w_var) + b_var
    kld = -0.5 * jnp.sum(1.0 + var - mean ** 2 - jnp.exp(var + EPS), axis=(0, 2))
    z = mean + noise * jnp.exp(0.5 * var + EPS)
    return z, kld


if __name__ == "__main__":
    key = jax.random.PRNGKey(0)
    B, T, Fin, Fout = 2, 16, 32, 32

    k_x, k_n, k_wm, k_bm, k_wv, k_bv = jax.random.split(key, 6)

    x = jax.random.normal(k_x, (B, T, Fin), dtype=jnp.float32)
    # Gaussian noise for the reparameterisation trick (generated on host so the
    # forward pass is deterministic given PRNGKey(0)).
    # TODO(synk): optionally generate in-kernel via pltpu.prng_seed/stateful_normal
    # to cut HBM traffic by ~1/3 (changes the RNG stream vs. this reference).
    noise = jax.random.normal(k_n, (B, T, Fout), dtype=jnp.float32)

    # Deterministic parameter init mimicking nn.Linear's U(-1/sqrt(Fin), 1/sqrt(Fin)).
    bound = 1.0 / (Fin ** 0.5)
    w_mean = jax.random.uniform(k_wm, (Fout, Fin), jnp.float32, -bound, bound)
    b_mean = jax.random.uniform(k_bm, (Fout,), jnp.float32, -bound, bound)
    w_var = jax.random.uniform(k_wv, (Fout, Fin), jnp.float32, -bound, bound)
    b_var = jax.random.uniform(k_bv, (Fout,), jnp.float32, -bound, bound)

    z, kld = variational_inference(x, noise, w_mean, b_mean, w_var, b_var)
    jax.block_until_ready((z, kld))

    z_ref, kld_ref = _reference(x, noise, w_mean, b_mean, w_var, b_var)
    assert z.shape == (B, T, Fout) and kld.shape == (T,)
    assert jnp.allclose(z, z_ref, atol=1e-5, rtol=1e-5)
    assert jnp.allclose(kld, kld_ref, atol=1e-4, rtol=1e-4)

    print("KERNEL_OK")
</pallas_src>

<mosaic_0001>
module attributes {stable_mosaic.version = 11 : i64} {
  func.func @_vi_kernel(%arg0: i32, %arg1: memref<2x16x32xf32, #tpu.memory_space<vmem>>, %arg2: memref<2x16x32xf32, #tpu.memory_space<vmem>>, %arg3: memref<32x64xf32, #tpu.memory_space<vmem>>, %arg4: memref<1x64xf32, #tpu.memory_space<vmem>>, %arg5: memref<2x16x32xf32, #tpu.memory_space<vmem>>, %arg6: memref<1x16xf32, #tpu.memory_space<vmem>>) attributes {dimension_semantics = [#tpu.dimension_semantics<parallel>], iteration_bounds = array<i64: 1>, scalar_prefetch = 0 : i64, scratch_operands = 0 : i64, tpu.core_type = #tpu.core_type<tc>, window_params = [{transform_indices = @transform_0, window_bounds = array<i64: 2, 16, 32>}, {transform_indices = @transform_1, window_bounds = array<i64: 2, 16, 32>}, {pipeline_mode = #tpu.pipeline_mode<synchronous>, transform_indices = @transform_2, window_bounds = array<i64: 32, 64>}, {pipeline_mode = #tpu.pipeline_mode<synchronous>, transform_indices = @transform_3, window_bounds = array<i64: 1, 64>}, {transform_indices = @transform_4, window_bounds = array<i64: 2, 16, 32>}, {transform_indices = @transform_5, window_bounds = array<i64: 1, 16>}]} {
    %c0 = arith.constant 0 : index
    %c0_0 = arith.constant 0 : index
    %c0_1 = arith.constant 0 : index
    %0 = vector.load %arg1[%c0, %c0_0, %c0_1] : memref<2x16x32xf32, #tpu.memory_space<vmem>>, vector<2x16x32xf32>
    %1 = vector.shape_cast %0 : vector<2x16x32xf32> to vector<32x32xf32>
    %c0_2 = arith.constant 0 : index
    %c0_3 = arith.constant 0 : index
    %2 = vector.load %arg3[%c0_2, %c0_3] : memref<32x64xf32, #tpu.memory_space<vmem>>, vector<32x64xf32>
    %cst = arith.constant dense<0.000000e+00> : vector<32x64xf32>
    %3 = tpu.matmul %1, %2, %cst {dimension_numbers = #tpu.dot_dimension_numbers<[1], [0], [0], [1], [0, 0, 1, 1], [], []>} : vector<32x32xf32>, vector<32x64xf32>, vector<32x64xf32> -> vector<32x64xf32>
    %c0_4 = arith.constant 0 : index
    %c0_5 = arith.constant 0 : index
    %4 = vector.load %arg4[%c0_4, %c0_5] : memref<1x64xf32, #tpu.memory_space<vmem>>, vector<1x64xf32>
    %5 = vector.broadcast %4 : vector<1x64xf32> to vector<32x64xf32>
    %6 = arith.addf %3, %5 : vector<32x64xf32>
    %7 = vector.extract_strided_slice %6 {offsets = [0, 0], sizes = [32, 32], strides = [1, 1]} : vector<32x64xf32> to vector<32x32xf32>
    %8 = vector.extract_strided_slice %6 {offsets = [0, 32], sizes = [32, 32], strides = [1, 1]} : vector<32x64xf32> to vector<32x32xf32>
    %cst_6 = arith.constant 5.000000e-01 : f32
    %9 = vector.broadcast %cst_6 : f32 to vector<32x32xf32>
    %10 = arith.mulf %9, %8 : vector<32x32xf32>
    %11 = math.exp %10 : vector<32x32xf32>
    %c0_7 = arith.constant 0 : index
    %c0_8 = arith.constant 0 : index
    %c0_9 = arith.constant 0 : index
    %12 = vector.load %arg2[%c0_7, %c0_8, %c0_9] : memref<2x16x32xf32, #tpu.memory_space<vmem>>, vector<2x16x32xf32>
    %13 = vector.shape_cast %12 : vector<2x16x32xf32> to vector<32x32xf32>
    %14 = arith.mulf %13, %11 : vector<32x32xf32>
    %15 = arith.addf %7, %14 : vector<32x32xf32>
    %16 = vector.shape_cast %15 : vector<32x32xf32> to vector<2x16x32xf32>
    %c0_10 = arith.constant 0 : index
    %c0_11 = arith.constant 0 : index
    %c0_12 = arith.constant 0 : index
    %17 = vector.load %arg5[%c0_10, %c0_11, %c0_12] : memref<2x16x32xf32, #tpu.memory_space<vmem>>, vector<2x16x32xf32>
    tpu.vector_store %arg5[%c0_10, %c0_11, %c0_12], %16 {strides = array<i32>} : memref<2x16x32xf32, #tpu.memory_space<vmem>>, vector<2x16x32xf32>,
    %cst_13 = arith.constant 1.000000e+00 : f32
    %18 = vector.broadcast %cst_13 : f32 to vector<32x32xf32>
    %19 = arith.addf %18, %8 : vector<32x32xf32>
    %20 = arith.mulf %7, %7 : vector<32x32xf32>
    %21 = arith.subf %19, %20 : vector<32x32xf32>
    %22 = arith.mulf %11, %11 : vector<32x32xf32>
    %23 = arith.subf %21, %22 : vector<32x32xf32>
    %24 = vector.shape_cast %23 : vector<32x32xf32> to vector<2x16x32xf32>
    %cst_14 = arith.constant dense<0.000000e+00> : vector<16xf32>
    %25 = vector.multi_reduction <add>, %24, %cst_14 [0, 2] : vector<2x16x32xf32> to vector<16xf32>
    %cst_15 = arith.constant -5.000000e-01 : f32
    %26 = vector.broadcast %cst_15 : f32 to vector<16xf32>
    %27 = arith.mulf %26, %25 : vector<16xf32>
    %28 = vector.shape_cast %27 : vector<16xf32> to vector<1x16xf32>
    %c0_16 = arith.constant 0 : index
    %c0_17 = arith.constant 0 : index
    %29 = vector.load %arg6[%c0_16, %c0_17] : memref<1x16xf32, #tpu.memory_space<vmem>>, vector<1x16xf32>
    tpu.vector_store %arg6[%c0_16, %c0_17], %28 {strides = array<i32>} : memref<1x16xf32, #tpu.memory_space<vmem>>, vector<1x16xf32>,
    return
  }
  func.func @transform_0(%arg0: i32) -> (i32, i32, i32) {
    %c0_i32 = arith.constant 0 : i32
    %c0_i32_0 = arith.constant 0 : i32
    %c0_i32_1 = arith.constant 0 : i32
    return %c0_i32, %arg0, %c0_i32_0 : i32, i32, i32
  }
  func.func @transform_1(%arg0: i32) -> (i32, i32, i32) {
    %c0_i32 = arith.constant 0 : i32
    %c0_i32_0 = arith.constant 0 : i32
    %c0_i32_1 = arith.constant 0 : i32
    return %c0_i32, %arg0, %c0_i32_0 : i32, i32, i32
  }
  func.func @transform_2(%arg0: i32) -> (i32, i32) {
    %c0_i32 = arith.constant 0 : i32
    %c0_i32_0 = arith.constant 0 : i32
    %c0_i32_1 = arith.constant 0 : i32
    return %c0_i32, %c0_i32_0 : i32, i32
  }
  func.func @transform_3(%arg0: i32) -> (i32, i32) {
    %c0_i32 = arith.constant 0 : i32
    %c0_i32_0 = arith.constant 0 : i32
    %c0_i32_1 = arith.constant 0 : i32
    return %c0_i32, %c0_i32_0 : i32, i32
  }
  func.func @transform_4(%arg0: i32) -> (i32, i32, i32) {
    %c0_i32 = arith.constant 0 : i32
    %c0_i32_0 = arith.constant 0 : i32
    %c0_i32_1 = arith.constant 0 : i32
    return %c0_i32, %arg0, %c0_i32_0 : i32, i32, i32
  }
  func.func @transform_5(%arg0: i32) -> (i32, i32) {
    %c0_i32 = arith.constant 0 : i32
    %c0_i32_0 = arith.constant 0 : i32
    return %c0_i32, %arg0 : i32, i32
  }
}

</mosaic_0001>

<llo_original>
// kernel: tpu_custom_call.1
$region0: #{tpu_custom_call.1}
  #allocation0 [shape = 'u32[]', space=smem, size = 0x4, offset = 0x4, fixed_abs, tag = 'smem constant byte address 0x4 - core index']
  #allocation1 [shape = 'u32[144,128]{1,0:T(1,128)}', space=vmem, size = 0x12000, scoped, tag = 'internal scratch']
  %s0 = inlined_call_operand.hbm [shape: f32[2,16,32], index: 0, kind: input, shape index: {}]
  %s1 = inlined_call_operand.hbm [shape: f32[2,16,32], index: 1, kind: input, shape index: {}]
  %s2 = inlined_call_operand.hbm [shape: f32[32,64], index: 2, kind: input, shape index: {}]
  %s3 = inlined_call_operand.vmem [shape: f32[1,64], index: 3, kind: input, shape index: {}]
  %s4 = inlined_call_operand.hbm [shape: f32[2,16,32], index: 4, kind: output, shape index: {0}]
  %s5 = inlined_call_operand.hbm [shape: f32[1,16], index: 5, kind: output, shape index: {1}]
  %6 = xla_tuple %s4, %s5
  %s7 = sld [smem:[#allocation0]]
  $region46: #{tpu_custom_call.1} parent=0
    _
  %s9 = ssub.s32 1, %s7
  %s10 = scalar_select 0, %s9, %s7
  $region1: #{tpu_custom_call.1} parent=0
    #allocation2 [shape = 'u8[16384]{0}', space=vmem, size = 0x4000, scoped, tag = 'input window, operand 0, single buffered']
    #allocation3 [shape = 's32[1]{0}', space=sflag, size = 0x4, scoped, tag = 'scoped memory for tpu_custom_call.1']
    #allocation4 [shape = 's32[1]{0}', space=sflag, size = 0x4, scoped, tag = 'scoped memory for tpu_custom_call.1']
    #allocation5 [shape = 'u8[16384]{0}', space=vmem, size = 0x4000, scoped, tag = 'input window, operand 1, single buffered']
    #allocation6 [shape = 's32[1]{0}', space=sflag, size = 0x4, scoped, tag = 'scoped memory for tpu_custom_call.1']
    #allocation7 [shape = 'u8[16384]{0}', space=vmem, size = 0x4000, scoped, tag = 'input window, operand 2, single buffered']
    #allocation8 [shape = 'u8[16384]{0}', space=vmem, size = 0x4000, scoped, tag = 'output window, operand 0, single buffered']
    #allocation9 [shape = 'u8[512]{0}', space=vmem, size = 0x400, scoped, tag = 'output window, operand 1, single buffered']
    #allocation10 [shape = 's32[1]{0}', space=sflag, size = 0x4, scoped, tag = 'scoped memory for tpu_custom_call.1']
    %11 = vsyncpa [#allocation3], 0
    %12 = vsyncpa [#allocation6], 0
    %13 = vsyncpa [#allocation4], 0
    %14 = vsyncpa [#allocation10], 0
    // Predicated region
    $region2: #{tpu_custom_call.1} parent=1 // pred_check
      _
    $region3: #{tpu_custom_call.1} parent=1 // pred_check_branch
      %16 = sbr.rel (0) target = $region5
    $region4: #{tpu_custom_call.1} parent=1 // pred_region
      %s18 = ssub.s32 512, 512
      %19 = vsyncadd [#allocation3], %s18
      %s20 = sshll.u32 [#allocation2], 4
      %s21 = int_to_ptr.vmem [resolvable:$true] %s20
      %26 = dma.hbm_to_vmem [thread:$0]  %s0, 512, %s21, [#allocation3], 128, 128, 8
    $region5: #{tpu_custom_call.1} parent=1 // pred_fallthru
      _
    // Predicated region
    $region6: #{tpu_custom_call.1} parent=1 // pred_check
      _
    $region7: #{tpu_custom_call.1} parent=1 // pred_check_branch
      %28 = sbr.rel (0) target = $region9
    $region8: #{tpu_custom_call.1} parent=1 // pred_region
      %s30 = ssub.s32 512, 512
      %31 = vsyncadd [#allocation6], %s30
      %s32 = sshll.u32 [#allocation5], 4
      %s33 = int_to_ptr.vmem [resolvable:$true] %s32
      %38 = dma.hbm_to_vmem [thread:$0]  %s1, 512, %s33, [#allocation6], 128, 128, 8
    $region9: #{tpu_custom_call.1} parent=1 // pred_fallthru
      _
    // Predicated region
    $region10: #{tpu_custom_call.1} parent=1 // pred_check
      _
    $region11: #{tpu_custom_call.1} parent=1 // pred_check_branch
      %40 = sbr.rel (0) target = $region13
    $region12: #{tpu_custom_call.1} parent=1 // pred_region
      %s42 = ssub.s32 512, 512
      %43 = vsyncadd [#allocation6], %s42
      %s44 = sshll.u32 [#allocation7], 4
      %s45 = int_to_ptr.vmem [resolvable:$true] %s44
      %50 = dma.hbm_to_vmem [thread:$0]  %s2, 512, %s45, [#allocation6], 128, 128, 8
    $region13: #{tpu_custom_call.1} parent=1 // pred_fallthru
      _
    // Predicated region
    $region14: #{tpu_custom_call.1} parent=1 // pred_check
      _
    $region15: #{tpu_custom_call.1} parent=1 // pred_check_branch
      %52 = sbr.rel (0) target = $region17
    $region16: #{tpu_custom_call.1} parent=1 // pred_region
      _
    $region17: #{tpu_custom_call.1} parent=1 // pred_fallthru
      _
    // Predicated region
    $region18: #{tpu_custom_call.1} parent=1 // pred_check
      _
    $region19: #{tpu_custom_call.1} parent=1 // pred_check_branch
      %54 = sbr.rel (0) target = $region21
    $region20: #{tpu_custom_call.1} parent=1 // pred_region
      %55 = dma.done [#allocation3], 512
    $region21: #{tpu_custom_call.1} parent=1 // pred_fallthru
      _
    // Predicated region
    $region22: #{tpu_custom_call.1} parent=1 // pred_check
      _
    $region23: #{tpu_custom_call.1} parent=1 // pred_check_branch
      %57 = sbr.rel (0) target = $region25
    $region24: #{tpu_custom_call.1} parent=1 // pred_region
      %58 = dma.done [#allocation6], 512
    $region25: #{tpu_custom_call.1} parent=1 // pred_fallthru
      _
    // Predicated region
    $region26: #{tpu_custom_call.1} parent=1 // pred_check
      _
    $region27: #{tpu_custom_call.1} parent=1 // pred_check_branch
      %60 = sbr.rel (0) target = $region29
    $region28: #{tpu_custom_call.1} parent=1 // pred_region
      %61 = dma.done [#allocation6], 512
    $region29: #{tpu_custom_call.1} parent=1 // pred_fallthru
      _
    %v62 = vld [vmem:[#allocation2] sm:$0xff]
    %v63 = vld [vmem:[#allocation2 + $0x8] sm:$0xff]
    %v64 = vld [vmem:[#allocation2 + $0x10] sm:$0xff]
    %v65 = vld [vmem:[#allocation2 + $0x18] sm:$0xff]
    %v66 = vld [vmem:[#allocation7] sm:$0xff]
    %v67 = vld [vmem:[#allocation7 + $0x8] sm:$0xff]
    %v68 = vld [vmem:[#allocation7 + $0x10] sm:$0xff]
    %v69 = vld [vmem:[#allocation7 + $0x18] sm:$0xff]
    %v70 = vld [vmem:[%s3] sm:$0x1]
    %v72 = vlaneseq
    %v73 = vshrl.u32 %v72, 7
    %v74 = vsub.s32 0, %v73
    %v75 = vrot.slane %v70, %v74
    %vm77 = vcmask 261120
    %v79 = vsel %vm77, %v62, 0
    %v82 = vsel %vm77, %v63, 0
    %v85 = vsel %vm77, %v64, 0
    %v88 = vsel %vm77, %v65, 0
    %90 = vmatprep.subr.mxu0 0.0
    %91 = vmatpush1.msra.mxu0 0.0
    %92 = vmatprep.subr.mxu0 0.0
    %93 = vmatpush1.msra.mxu0 0.0
    %94 = vmatprep.subr.mxu0 0.0
    %95 = vmatpush1.msra.mxu0 0.0
    %96 = vmatprep.subr.mxu0 0.0
    %97 = vmatpush1.msra.mxu0 0.0
    %98 = vmatprep.subr.mxu0 0.0
    %99 = vmatpush1.msra.mxu0 0.0
    %100 = vmatprep.subr.mxu0 0.0
    %101 = vmatpush1.msra.mxu0 0.0
    %102 = vmatprep.subr.mxu0 0.0
    %103 = vmatpush1.msra.mxu0 0.0
    %104 = vmatprep.subr.mxu0 0.0
    %105 = vmatpush1.msra.mxu0 0.0
    %106 = vmatprep.subr.mxu0 0.0
    %107 = vmatpush1.msra.mxu0 0.0
    %108 = vmatprep.subr.mxu0 0.0
    %109 = vmatpush1.msra.mxu0 0.0
    %110 = vmatprep.subr.mxu0 0.0
    %111 = vmatpush1.msra.mxu0 0.0
    %112 = vmatprep.subr.mxu0 0.0
    %113 = vmatpush1.msra.mxu0 0.0
    %114 = vmatprep.subr.mxu0 0.0
    %115 = vmatpush1.msra.mxu0 %v69
    %116 = vmatprep.subr.mxu0 0.0
    %117 = vmatpush1.msra.mxu0 %v68
    %118 = vmatprep.subr.mxu0 0.0
    %119 = vmatpush1.msra.mxu0 %v67
    %120 = vmatprep.subr.mxu0 0.0
    %121 = vmatpush1.msra.mxu0 %v66
    %122 = vmatprep.subr.mxu0 0.0
    %123 = vmatpush2.msra.mxu0 0.0
    %124 = vmatprep.subr.mxu0 0.0
    %125 = vmatpush2.msra.mxu0 0.0
    %126 = vmatprep.subr.mxu0 0.0
    %127 = vmatpush2.msra.mxu0 0.0
    %128 = vmatprep.subr.mxu0 0.0
    %129 = vmatpush2.msra.mxu0 0.0
    %130 = vmatprep.subr.mxu0 0.0
    %131 = vmatpush2.msra.mxu0 0.0
    %132 = vmatprep.subr.mxu0 0.0
    %133 = vmatpush2.msra.mxu0 0.0
    %134 = vmatprep.subr.mxu0 0.0
    %135 = vmatpush2.msra.mxu0 0.0
    %136 = vmatprep.subr.mxu0 0.0
    %137 = vmatpush2.msra.mxu0 0.0
    %138 = vmatprep.subr.mxu0 0.0
    %139 = vmatpush2.msra.mxu0 0.0
    %140 = vmatprep.subr.mxu0 0.0
    %141 = vmatpush2.msra.mxu0 0.0
    %142 = vmatprep.subr.mxu0 0.0
    %143 = vmatpush2.msra.mxu0 0.0
    %144 = vmatprep.subr.mxu0 0.0
    %145 = vmatpush2.msra.mxu0 0.0
    %146 = vmatprep.subr.mxu0 0.0
    %147 = vmatpush2.msra.mxu0 0.0
    %148 = vmatprep.subr.mxu0 0.0
    %149 = vmatpush2.msra.mxu0 0.0
    %150 = vmatprep.subr.mxu0 0.0
    %151 = vmatpush2.msra.mxu0 0.0
    %152 = vmatprep.subr.mxu0 0.0
    %153 = vmatpush2.msra.mxu0 0.0
    %154 = vmatprep.mubr.f32.mxu0 0.0
    %155 = vmatmul.mubr.f32.gmra.mxu0 %v79
    %v156 = vpop.f32.mrf.mxu0
    %v157 = vadd.f32 %v75, %v156
    %v158 = vpop.f32.mrf.mxu0
    %159 = vmatprep.mubr.f32.mxu0 0.0
    %160 = vmatmul.mubr.f32.gmra.mxu0 %v82
    %v161 = vpop.f32.mrf.mxu0
    %v162 = vadd.f32 %v75, %v161
    %v163 = vpop.f32.mrf.mxu0
    %164 = vmatprep.mubr.f32.mxu0 0.0
    %165 = vmatmul.mubr.f32.gmra.mxu0 %v85
    %v166 = vpop.f32.mrf.mxu0
    %v167 = vadd.f32 %v75, %v166
    %v168 = vpop.f32.mrf.mxu0
    %169 = vmatprep.mubr.f32.mxu0 0.0
    %170 = vmatmul.mubr.f32.gmra.mxu0 %v88
    %v171 = vpop.f32.mrf.mxu0
    %v172 = vadd.f32 %v75, %v171
    %v173 = vpop.f32.mrf.mxu0
    %174 = vdwg.mxu0
    %v175 = vmul.f32 %v157, 0.5
    %v176 = vmul.f32 %v162, 0.5
    %v177 = vmul.f32 %v167, 0.5
    %v178 = vmul.f32 %v172, 0.5
    %v179 = vmul.f32 %v175, 1.442695
    %v180 = vpow.pop %v179
    %v181 = vmul.f32 %v176, 1.442695
    %v182 = vpow.pop %v181
    %v183 = vmul.f32 %v177, 1.442695
    %v184 = vpow.pop %v183
    %v185 = vmul.f32 %v178, 1.442695
    %v186 = vpow.pop %v185
    %v187 = vld [vmem:[#allocation5] sm:$0xff]
    %v188 = vld [vmem:[#allocation5 + $0x8] sm:$0xff]
    %v189 = vld [vmem:[#allocation5 + $0x10] sm:$0xff]
    %v190 = vld [vmem:[#allocation5 + $0x18] sm:$0xff]
    %195 = vrot.lane.b32.xlu0 %v180, 96
    %v196 = vpop.permute.xlu0 %195
    %197 = vrot.lane.b32.xlu0 %v182, 96
    %v198 = vpop.permute.xlu0 %197
    %199 = vrot.lane.b32.xlu0 %v184, 96
    %v200 = vpop.permute.xlu0 %199
    %201 = vrot.lane.b32.xlu0 %v186, 96
    %v202 = vpop.permute.xlu0 %201
    %v207 = vmul.f32 %v187, %v196
    %v208 = vmul.f32 %v188, %v198
    %v209 = vmul.f32 %v189, %v200
    %v210 = vmul.f32 %v190, %v202
    %v211 = vadd.f32 %v157, %v207
    %v212 = vadd.f32 %v162, %v208
    %v213 = vadd.f32 %v167, %v209
    %v214 = vadd.f32 %v172, %v210
    %215 = vst.msk [vmem:[#allocation8] sm:$0xff] %vm77, %v211
    %216 = vst.msk [vmem:[#allocation8 + $0x8] sm:$0xff] %vm77, %v212
    %217 = vst.msk [vmem:[#allocation8 + $0x10] sm:$0xff] %vm77, %v213
    %218 = vst.msk [vmem:[#allocation8 + $0x18] sm:$0xff] %vm77, %v214
    %v219 = vadd.f32 %v157, 1.0
    %v220 = vadd.f32 %v162, 1.0
    %v221 = vadd.f32 %v167, 1.0
    %v222 = vadd.f32 %v172, 1.0
    %v223 = vmul.f32 %v157, %v157
    %v224 = vmul.f32 %v162, %v162
    %v225 = vmul.f32 %v167, %v167
    %v226 = vmul.f32 %v172, %v172
    %231 = vrot.lane.b32.xlu0 %v223, 32
    %v232 = vpop.permute.xlu0 %231
    %233 = vrot.lane.b32.xlu0 %v224, 32
    %v234 = vpop.permute.xlu0 %233
    %235 = vrot.lane.b32.xlu0 %v225, 32
    %v236 = vpop.permute.xlu0 %235
    %237 = vrot.lane.b32.xlu0 %v226, 32
    %v238 = vpop.permute.xlu0 %237
    %v243 = vsub.f32 %v219, %v232
    %v244 = vsub.f32 %v220, %v234
    %v245 = vsub.f32 %v221, %v236
    %v246 = vsub.f32 %v222, %v238
    %v247 = vmul.f32 %v180, %v180
    %v248 = vmul.f32 %v182, %v182
    %v249 = vmul.f32 %v184, %v184
    %v250 = vmul.f32 %v186, %v186
    %v251 = vsub.f32 %v243, %v247
    %v252 = vsub.f32 %v244, %v248
    %v253 = vsub.f32 %v245, %v249
    %v254 = vsub.f32 %v246, %v250
    %259 = vrot.lane.b32.xlu0 %v251, 96
    %v260 = vpop.permute.xlu0 %259
    %261 = vrot.lane.b32.xlu0 %v252, 96
    %v262 = vpop.permute.xlu0 %261
    %263 = vrot.lane.b32.xlu0 %v253, 96
    %v264 = vpop.permute.xlu0 %263
    %265 = vrot.lane.b32.xlu0 %v254, 96
    %v266 = vpop.permute.xlu0 %265
    %v271 = vsel %vm77, %v260, 0.0
    %v272 = vsel %vm77, %v264, 0.0
    %v273 = vadd.f32 %v271, %v272
    %274 = vadd.xlane.f32.xlu0 %v273
    %v275 = vpop.xlane.xlu0 %274
    %v276 = vsel %vm77, %v262, 0.0
    %v277 = vsel %vm77, %v266, 0.0
    %v278 = vadd.f32 %v276, %v277
    %279 = vadd.xlane.f32.xlu0 %v278
    %v280 = vpop.xlane.xlu0 %279
    %v281 = vmul.f32 %v275, -0.5
    %v282 = vmul.f32 %v280, -0.5
    %v285 = vlaneseq
    %v286 = vand.u32 %v285, 127
    %v287 = vlaneseq
    %v288 = vshrl.u32 %v287, 7
    %v289 = vsub.s32 %v286, %v288
    %v290 = vrot.slane %v281, %v289
    %v291 = vadd.s32 %v286, 4294967288
    %v292 = vlaneseq
    %v293 = vshrl.u32 %v292, 7
    %v294 = vsub.s32 %v291, %v293
    %v295 = vrot.slane %v282, %v294
    %vm296 = vcmask 130112
    %v297 = vsel %vm296, %v295, %v290
    %vm299 = vcmask 122880
    %300 = vst.msk [vmem:[#allocation9] sm:$0x1] %vm299, %v297
    // Predicated region
    $region30: #{tpu_custom_call.1} parent=1 // pred_check
      _
    $region31: #{tpu_custom_call.1} parent=1 // pred_check_branch
      %302 = sbr.rel (0) target = $region33
    $region32: #{tpu_custom_call.1} parent=1 // pred_region
      %s304 = ssub.s32 512, 512
      %305 = vsyncadd [#allocation4], %s304
      %s306 = sshll.u32 [#allocation8], 4
      %s307 = int_to_ptr.vmem [resolvable:$true] %s306
      %312 = dma.vmem_to_hbm [thread:$0]  %s307, 512, %s4, [#allocation4], 128, 128, 8
    $region33: #{tpu_custom_call.1} parent=1 // pred_fallthru
      _
    // Predicated region
    $region34: #{tpu_custom_call.1} parent=1 // pred_check
      _
    $region35: #{tpu_custom_call.1} parent=1 // pred_check_branch
      %314 = sbr.rel (0) target = $region37
    $region36: #{tpu_custom_call.1} parent=1 // pred_region
      %s316 = ssub.s32 16, 16
      %317 = vsyncadd [#allocation10], %s316
      %s319 = sshll.u32 [#allocation9], 4
      %s320 = int_to_ptr.vmem [resolvable:$true] %s319
      %322 = dma.vmem_to_hbm [thread:$0]  %s320, 16, %s5, [#allocation10]
    $region37: #{tpu_custom_call.1} parent=1 // pred_fallthru
      _
    // Predicated region
    $region38: #{tpu_custom_call.1} parent=1 // pred_check
      _
    $region39: #{tpu_custom_call.1} parent=1 // pred_check_branch
      %324 = sbr.rel (0) target = $region41
    $region40: #{tpu_custom_call.1} parent=1 // pred_region
      %325 = dma.done [#allocation4], 512
    $region41: #{tpu_custom_call.1} parent=1 // pred_fallthru
      _
    // Predicated region
    $region42: #{tpu_custom_call.1} parent=1 // pred_check
      _
    $region43: #{tpu_custom_call.1} parent=1 // pred_check_branch
      %327 = sbr.rel (0) target = $region45
    $region44: #{tpu_custom_call.1} parent=1 // pred_region
      %328 = dma.done [#allocation10], 16
    $region45: #{tpu_custom_call.1} parent=1 // pred_fallthru
      _
    %329 = vsyncpa [#allocation3], 1
    %330 = vsyncpa [#allocation6], 1
    %331 = vsyncpa [#allocation4], 1
    %332 = vsyncpa [#allocation10], 1

</llo_original>
